<compile_context>
chip_gen: v6e
topology: v6e:2x2x1
jax: 0.10.0
libtpu: 0.0.40
codegen_flags: <defaults>
</compile_context>

<pallas_src>
import functools

import jax
import jax.numpy as jnp
from jax.experimental import pallas as pl
from jax.experimental.pallas import tpu as pltpu


def _round_up(x, m):
    return ((x + m - 1) // m) * m


def _vmem_capacity_bytes():
    """Physical per-core VMEM (v5e/v6e: 128 MiB, v7x: 64 MiB)."""
    try:
        return int(pltpu.get_tpu_info().vmem_capacity_bytes)
    except Exception:
        return 64 << 20   # conservative fallback (v7x per-TC VMEM)


# ---------------------------------------------------------------------------
# Fast path: fused single-block kernel (activation resident in VMEM).
# ---------------------------------------------------------------------------
def _fused_kernel(mw_ref, vw_ref, x_ref, g_ref, b_ref, o_ref, *, eps, hw):
    x = x_ref[...]                                           # (N, C, HW)
    xf = x if x.dtype == jnp.float32 else x.astype(jnp.float32)

    # Data is VMEM-resident, so a second sweep for the centered (two-pass)
    # variance is free in HBM terms and avoids sum-of-squares cancellation.
    mean_in = jnp.sum(xf, axis=-1, keepdims=True) * (1.0 / hw)   # (N, C, 1)
    centered = xf - mean_in
    # torch.Tensor.var default is the unbiased estimator (ddof=1).
    # TODO(synk): hw == 1 yields NaN here, exactly like the PyTorch module.
    inv_hw_m1 = (1.0 / (hw - 1)) if hw > 1 else float("nan")
    var_in = jnp.sum(centered * centered, axis=-1, keepdims=True) * inv_hw_m1

    mean_ln = jnp.mean(mean_in, axis=1, keepdims=True)       # (N, 1, 1)
    temp = var_in + mean_in * mean_in
    var_ln = jnp.mean(temp, axis=1, keepdims=True) - mean_ln * mean_ln
    mean_bn = jnp.mean(mean_in, axis=0, keepdims=True)       # (1, C, 1)
    var_bn = jnp.mean(temp, axis=0, keepdims=True) - mean_bn * mean_bn

    mean = mw_ref[0] * mean_in + mw_ref[1] * mean_ln + mw_ref[2] * mean_bn
    var = vw_ref[0] * var_in + vw_ref[1] * var_ln + vw_ref[2] * var_bn

    # rsqrt (EUP) applied only N*C times; hot loop is a single FMA per element.
    scale = g_ref[...] * jax.lax.rsqrt(var + eps)            # (N, C, 1)
    shift = b_ref[...] - mean * scale
    o_ref[...] = (xf * scale + shift).astype(o_ref.dtype)


def _switch_norm_fused(x3, g, b, mw, vw, eps, hw, vmem_cap):
    N, C, _ = x3.shape
    return pl.pallas_call(
        functools.partial(_fused_kernel, eps=eps, hw=hw),
        grid=(1,),
        in_specs=[
            pl.BlockSpec(memory_space=pltpu.MemorySpace.SMEM),   # softmax(mean_weight), (3,)
            pl.BlockSpec(memory_space=pltpu.MemorySpace.SMEM),   # softmax(var_weight),  (3,)
            pl.BlockSpec((N, C, hw), lambda i: (0, 0, 0)),       # x, full block in VMEM
            pl.BlockSpec((1, C, 1), lambda i: (0, 0, 0)),        # gamma
            pl.BlockSpec((1, C, 1), lambda i: (0, 0, 0)),        # beta
        ],
        out_specs=pl.BlockSpec((N, C, hw), lambda i: (0, 0, 0)),
        out_shape=jax.ShapeDtypeStruct((N, C, hw), x3.dtype),
        compiler_params=pltpu.CompilerParams(
            dimension_semantics=("arbitrary",),
            # Raise the scoped VMEM limit above the 16/32 MiB defaults so the
            # larger fused window actually compiles on v5e/v6e/v7x.
            vmem_limit_bytes=min(int(vmem_cap * 0.92), 116 << 20)),
    )(mw, vw, x3, g, b)


# ---------------------------------------------------------------------------
# Tiled two-pass path (any activation size).
# ---------------------------------------------------------------------------
def _stats_kernel(x_ref, out_ref, sum_acc, ssq_acc, *, hw, tile_hw, chunk,
                  need_mask):
    k = pl.program_id(1)                                     # HW (reduction) axis
    nk = pl.num_programs(1)

    @pl.when(k == 0)
    def _init():
        sum_acc[...] = jnp.zeros_like(sum_acc)
        ssq_acc[...] = jnp.zeros_like(ssq_acc)

    n_chunks = tile_hw // chunk                              # exact by construction

    def accumulate(masked):
        # Lane-dense accumulation into a (rows, chunk) f32 scratch: pure VPU
        # adds per tile; the cross-lane reduce is deferred to the epilogue.
        def body(j, carry):
            start = pl.multiple_of(j * chunk, chunk)
            v = x_ref[:, pl.ds(start, chunk)]
            v = v if v.dtype == jnp.float32 else v.astype(jnp.float32)
            if masked:
                col = (k * tile_hw + j * chunk
                       + jax.lax.broadcasted_iota(jnp.int32, v.shape, 1))
                v = jnp.where(col < hw, v, 0.0)
            sum_acc[...] += v
            ssq_acc[...] += v * v
            return carry
        jax.lax.fori_loop(0, n_chunks, body, 0, unroll=True)

    if need_mask:
        # Mask only the last HW tile; full tiles skip the iota/compare/select.
        @pl.when(k == nk - 1)
        def _tail():
            accumulate(True)

        @pl.when(k != nk - 1)
        def _full():
            accumulate(False)
    else:
        accumulate(False)

    @pl.when(k == nk - 1)
    def _epilogue():
        out_ref[:, 0:1] = jnp.sum(sum_acc[...], axis=-1, keepdims=True)
        out_ref[:, 1:2] = jnp.sum(ssq_acc[...], axis=-1, keepdims=True)


def _apply_kernel(x_ref, scale_ref, shift_ref, o_ref):
    # Pure FMA-shaped elementwise work; scale/shift are per-row lane-broadcasts.
    o_ref[...] = (x_ref[...] * scale_ref[...] + shift_ref[...]).astype(o_ref.dtype)


def _switch_norm_tiled(x3, weight, bias, mw, vw, eps, tile_rows, tile_hw,
                       vmem_cap):
    N, C, hw = x3.shape
    nr = N * C
    x2 = x3.reshape(nr, hw)

    # ---- tile selection -------------------------------------------------
    # Last-two block dims must be multiples of (8, 128) or the full extent.
    # Large tiles amortize the ~0.35 us per-grid-step overhead; keep >=2 row
    # blocks whenever possible so v7x's two TensorCores both get work on the
    # "parallel" row axis (the HW axis of pass 1 is the reduction).
    if tile_rows is None:
        if nr >= 16:
            tile_rows = min(512, _round_up(pl.cdiv(nr, 2), 8))
        else:
            tile_rows = nr
    if tile_hw is None:
        if hw <= 4096 and hw % 128 == 0:
            tile_hw = hw
        elif hw <= 2048:
            tile_hw = hw                 # full extent, single HW tile
        else:
            tile_hw = 2048

    if tile_hw % 512 == 0:
        chunk = 512
    elif tile_hw % 128 == 0:
        chunk = 128
    else:
        chunk = tile_hw                  # only when tile_hw == hw (single tile)

    grid = (pl.cdiv(nr, tile_rows), pl.cdiv(hw, tile_hw))
    need_mask = (hw % tile_hw) != 0

    # Scoped-VMEM budget from the actual working set (double-buffered blocks
    # plus scratch / f32 temps), capped at 85% of physical VMEM.
    in_bytes = tile_rows * tile_hw * x2.dtype.itemsize
    f32_tile = tile_rows * tile_hw * 4
    acc_bytes = 2 * tile_rows * chunk * 4
    need = max(2 * in_bytes + acc_bytes + 2 * tile_rows * chunk * 4,   # pass 1
               4 * in_bytes + f32_tile)                                # pass 2
    vmem_limit = min(int(vmem_cap * 0.85), max(need + (8 << 20), 32 << 20))

    # ---- pass 1: per-row sum / sum-of-squares (single sweep over x). ----
    stats = pl.pallas_call(
        functools.partial(_stats_kernel, hw=hw, tile_hw=tile_hw, chunk=chunk,
                          need_mask=need_mask),
        grid=grid,
        in_specs=[pl.BlockSpec((tile_rows, tile_hw), lambda i, k: (i, k))],
        out_specs=pl.BlockSpec((tile_rows, 2), lambda i, k: (i, 0)),   # resident
        out_shape=jax.ShapeDtypeStruct((nr, 2), jnp.float32),
        scratch_shapes=[pltpu.VMEM((tile_rows, chunk), jnp.float32),
                        pltpu.VMEM((tile_rows, chunk), jnp.float32)],
        compiler_params=pltpu.CompilerParams(
            dimension_semantics=("parallel", "arbitrary"),
            vmem_limit_bytes=vmem_limit),
    )(x2)

    # ---- tiny (N, C) IN/LN/BN mixing in plain JAX (a few KB of work). ----
    s = stats[:, 0].reshape(N, C)
    ss = stats[:, 1].reshape(N, C)
    mean_in = s / hw
    # TODO(synk): hw == 1 divides by zero here (inf/NaN), like the PyTorch module.
    # TODO(synk): single-sweep sum-of-squares variance can lose precision when
    # |mean| >> std at very large hw; the fused path uses the centered form.
    var_in = (ss - hw * mean_in * mean_in) / (hw - 1)
    var_in = jnp.maximum(var_in, 0.0)                        # guard f32 cancellation
    mean_ln = mean_in.mean(axis=1, keepdims=True)
    temp = var_in + mean_in * mean_in
    var_ln = temp.mean(axis=1, keepdims=True) - mean_ln * mean_ln
    mean_bn = mean_in.mean(axis=0, keepdims=True)
    var_bn = temp.mean(axis=0, keepdims=True) - mean_bn * mean_bn
    mean = mw[0] * mean_in + mw[1] * mean_ln + mw[2] * mean_bn
    var = vw[0] * var_in + vw[1] * var_ln + vw[2] * var_bn

    g = weight.reshape(1, C).astype(jnp.float32)
    b = bias.reshape(1, C).astype(jnp.float32)
    scale_nc = g * jax.lax.rsqrt(var + eps)                  # (N, C)
    shift_nc = b - mean * scale_nc
    scale2 = scale_nc.reshape(nr, 1)
    shift2 = shift_nc.reshape(nr, 1)

    # ---- pass 2: out = x * scale + shift (lane-dense output tiles). ----
    out2 = pl.pallas_call(
        _apply_kernel,
        grid=grid,
        in_specs=[
            pl.BlockSpec((tile_rows, tile_hw), lambda i, k: (i, k)),
            pl.BlockSpec((tile_rows, 1), lambda i, k: (i, 0)),
            pl.BlockSpec((tile_rows, 1), lambda i, k: (i, 0)),
        ],
        out_specs=pl.BlockSpec((tile_rows, tile_hw), lambda i, k: (i, k)),
        out_shape=jax.ShapeDtypeStruct((nr, hw), x3.dtype),
        compiler_params=pltpu.CompilerParams(
            dimension_semantics=("parallel", "parallel"),
            vmem_limit_bytes=vmem_limit),
    )(x2, scale2, shift2)
    return out2.reshape(N, C, hw)


# ---------------------------------------------------------------------------
# Public wrapper.
# ---------------------------------------------------------------------------
def switch_norm(x, weight, bias, mean_weight, var_weight, *, eps=1e-5,
                force_tiled=False, tile_rows=None, tile_hw=None):
    """SwitchNorm training-mode forward (using_bn=True).

    x: (N, C, H, W).  weight/bias: (1, C, 1, 1).  mean_weight/var_weight: (3,).
    """
    N, C, H, W = x.shape
    hw = H * W
    x3 = x.reshape(N, C, hw)

    # Parameter glue (tiny): softmax over the 3 switch weights.
    mw = jax.nn.softmax(mean_weight.astype(jnp.float32))
    vw = jax.nn.softmax(var_weight.astype(jnp.float32))

    # TODO(synk): running_mean / running_var moving-average buffer updates are a
    # training-time side effect that never affects the forward output; omitted.

    vmem_cap = _vmem_capacity_bytes()
    # Fused path saves the second HBM read of x (tiled path reads x twice).
    # Its working set is a small multiple of the f32 copy of x (input block +
    # centered temp + squared temp + output, double-buffered in the worst
    # case), so admit x while ~8x its f32 size still fits physical VMEM.
    x_f32_bytes = x.size * 4
    if (not force_tiled) and (x_f32_bytes * 8 <= vmem_cap):
        g = weight.reshape(1, C, 1).astype(jnp.float32)
        b = bias.reshape(1, C, 1).astype(jnp.float32)
        out = _switch_norm_fused(x3, g, b, mw, vw, eps, hw, vmem_cap)
    else:
        out = _switch_norm_tiled(x3, weight, bias, mw, vw, eps,
                                 tile_rows, tile_hw, vmem_cap)
    return out.reshape(N, C, H, W)


def switch_norm_ref(x, weight, bias, mean_weight, var_weight, eps=1e-5):
    """Pure-JAX reference mirroring the PyTorch forward (training, using_bn)."""
    N, C, H, W = x.shape
    xv = x.reshape(N, C, -1)
    mean_in = xv.mean(axis=-1, keepdims=True)
    var_in = xv.var(axis=-1, ddof=1, keepdims=True)
    mean_ln = mean_in.mean(axis=1, keepdims=True)
    temp = var_in + mean_in ** 2
    var_ln = temp.mean(axis=1, keepdims=True) - mean_ln ** 2
    mean_bn = mean_in.mean(axis=0, keepdims=True)
    var_bn = temp.mean(axis=0, keepdims=True) - mean_bn ** 2
    mw = jax.nn.softmax(mean_weight)
    vw = jax.nn.softmax(var_weight)
    mean = mw[0] * mean_in + mw[1] * mean_ln + mw[2] * mean_bn
    var = vw[0] * var_in + vw[1] * var_ln + vw[2] * var_bn
    xn = (xv - mean) / jnp.sqrt(var + eps)
    return xn.reshape(N, C, H, W) * weight + bias


if __name__ == "__main__":
    N, C, H, W = 2, 4, 16, 16
    key = jax.random.PRNGKey(0)
    x = jax.random.normal(key, (N, C, H, W), dtype=jnp.float32)

    # Deterministic parameter init matching SwitchNorm.reset_parameters():
    weight = jnp.ones((1, C, 1, 1), dtype=jnp.float32)       # gamma
    bias = jnp.zeros((1, C, 1, 1), dtype=jnp.float32)        # beta
    mean_weight = jnp.ones((3,), dtype=jnp.float32)
    var_weight = jnp.ones((3,), dtype=jnp.float32)

    ref = switch_norm_ref(x, weight, bias, mean_weight, var_weight, eps=1e-5)

    # 1) fused single-block fast path (default dispatch for this small shape).
    out_fast = jax.block_until_ready(
        switch_norm(x, weight, bias, mean_weight, var_weight, eps=1e-5))
    assert out_fast.shape == (N, C, H, W)
    assert jnp.allclose(out_fast, ref, atol=2e-5, rtol=1e-5), "fused path mismatch"

    # 2) forced tiled two-pass path with a multi-tile HW grid (256 / 128 = 2 tiles).
    out_tiled = jax.block_until_ready(
        switch_norm(x, weight, bias, mean_weight, var_weight, eps=1e-5,
                    force_tiled=True, tile_hw=128))
    assert jnp.allclose(out_tiled, ref, atol=2e-5, rtol=1e-5), "tiled path mismatch"

    # 3) tiled path with a non-divisible spatial extent (exercises the
    #    masked-last-tile branch in the stats pass and the partial output block).
    x2 = jax.random.normal(jax.random.PRNGKey(1), (2, 4, 12, 12), dtype=jnp.float32)
    ref2 = switch_norm_ref(x2, weight, bias, mean_weight, var_weight, eps=1e-5)
    out2 = jax.block_until_ready(
        switch_norm(x2, weight, bias, mean_weight, var_weight, eps=1e-5,
                    force_tiled=True, tile_hw=128))
    assert jnp.allclose(out2, ref2, atol=2e-5, rtol=1e-5), "masked tiled path mismatch"

    # 4) tiled path with default tile selection: 2 row blocks (megacore-shaped
    #    "parallel" row axis) and 512-wide chunked accumulation (hw = 1024).
    C3 = 8
    x3 = jax.random.normal(jax.random.PRNGKey(2), (4, C3, 32, 32), dtype=jnp.float32)
    w3 = jnp.ones((1, C3, 1, 1), dtype=jnp.float32)
    b3 = jnp.zeros((1, C3, 1, 1), dtype=jnp.float32)
    ref3 = switch_norm_ref(x3, w3, b3, mean_weight, var_weight, eps=1e-5)
    out3 = jax.block_until_ready(
        switch_norm(x3, w3, b3, mean_weight, var_weight, eps=1e-5,
                    force_tiled=True))
    assert jnp.allclose(out3, ref3, atol=1e-4, rtol=1e-4), "default tiled path mismatch"

    print("KERNEL_OK")
</pallas_src>

<mosaic_0001>
module attributes {stable_mosaic.version = 11 : i64} {
  func.func @_fused_kernel(%arg0: i32, %arg1: memref<3xf32, #tpu.memory_space<smem>>, %arg2: memref<3xf32, #tpu.memory_space<smem>>, %arg3: memref<2x4x256xf32, #tpu.memory_space<vmem>>, %arg4: memref<1x4x1xf32, #tpu.memory_space<vmem>>, %arg5: memref<1x4x1xf32, #tpu.memory_space<vmem>>, %arg6: memref<2x4x256xf32, #tpu.memory_space<vmem>>) attributes {dimension_semantics = [#tpu.dimension_semantics<arbitrary>], iteration_bounds = array<i64: 1>, scalar_prefetch = 0 : i64, scratch_operands = 0 : i64, tpu.core_type = #tpu.core_type<tc>, window_params = [{transform_indices = @transform_0, window_bounds = array<i64: 3>}, {transform_indices = @transform_1, window_bounds = array<i64: 3>}, {pipeline_mode = #tpu.pipeline_mode<synchronous>, transform_indices = @transform_2, window_bounds = array<i64: 2, 4, 256>}, {pipeline_mode = #tpu.pipeline_mode<synchronous>, transform_indices = @transform_3, window_bounds = array<i64: 1, 4, 1>}, {pipeline_mode = #tpu.pipeline_mode<synchronous>, transform_indices = @transform_4, window_bounds = array<i64: 1, 4, 1>}, {pipeline_mode = #tpu.pipeline_mode<synchronous>, transform_indices = @transform_5, window_bounds = array<i64: 2, 4, 256>}]} {
    %c0 = arith.constant 0 : index
    %c0_0 = arith.constant 0 : index
    %c0_1 = arith.constant 0 : index
    %0 = vector.load %arg3[%c0, %c0_0, %c0_1] : memref<2x4x256xf32, #tpu.memory_space<vmem>>, vector<2x4x256xf32>
    %cst = arith.constant dense<0.000000e+00> : vector<2x4xf32>
    %1 = vector.multi_reduction <add>, %0, %cst [2] : vector<2x4x256xf32> to vector<2x4xf32>
    %2 = vector.shape_cast %1 : vector<2x4xf32> to vector<2x4x1xf32>
    %cst_2 = arith.constant 3.906250e-03 : f32
    %3 = vector.broadcast %cst_2 : f32 to vector<2x4x1xf32>
    %4 = arith.mulf %2, %3 : vector<2x4x1xf32>
    %5 = vector.broadcast %4 : vector<2x4x1xf32> to vector<2x4x256xf32>
    %6 = arith.subf %0, %5 : vector<2x4x256xf32>
    %7 = arith.mulf %6, %6 : vector<2x4x256xf32>
    %cst_3 = arith.constant dense<0.000000e+00> : vector<2x4xf32>
    %8 = vector.multi_reduction <add>, %7, %cst_3 [2] : vector<2x4x256xf32> to vector<2x4xf32>
    %9 = vector.shape_cast %8 : vector<2x4xf32> to vector<2x4x1xf32>
    %cst_4 = arith.constant 0.00392156886 : f32
    %10 = vector.broadcast %cst_4 : f32 to vector<2x4x1xf32>
    %11 = arith.mulf %9, %10 : vector<2x4x1xf32>
    %cst_5 = arith.constant dense<0.000000e+00> : vector<2x1xf32>
    %12 = vector.multi_reduction <add>, %4, %cst_5 [1] : vector<2x4x1xf32> to vector<2x1xf32>
    %13 = vector.shape_cast %12 : vector<2x1xf32> to vector<2x1x1xf32>
    %cst_6 = arith.constant 4.000000e+00 : f32
    %14 = vector.broadcast %cst_6 : f32 to vector<2x1x1xf32>
    %15 = arith.divf %13, %14 : vector<2x1x1xf32>
    %16 = arith.mulf %4, %4 : vector<2x4x1xf32>
    %17 = arith.addf %11, %16 : vector<2x4x1xf32>
    %cst_7 = arith.constant dense<0.000000e+00> : vector<2x1xf32>
    %18 = vector.multi_reduction <add>, %17, %cst_7 [1] : vector<2x4x1xf32> to vector<2x1xf32>
    %19 = vector.shape_cast %18 : vector<2x1xf32> to vector<2x1x1xf32>
    %cst_8 = arith.constant 4.000000e+00 : f32
    %20 = vector.broadcast %cst_8 : f32 to vector<2x1x1xf32>
    %21 = arith.divf %19, %20 : vector<2x1x1xf32>
    %22 = arith.mulf %15, %15 : vector<2x1x1xf32>
    %23 = arith.subf %21, %22 : vector<2x1x1xf32>
    %cst_9 = arith.constant dense<0.000000e+00> : vector<4x1xf32>
    %24 = vector.multi_reduction <add>, %4, %cst_9 [0] : vector<2x4x1xf32> to vector<4x1xf32>
    %25 = vector.shape_cast %24 : vector<4x1xf32> to vector<1x4x1xf32>
    %cst_10 = arith.constant 2.000000e+00 : f32
    %26 = vector.broadcast %cst_10 : f32 to vector<1x4x1xf32>
    %27 = arith.divf %25, %26 : vector<1x4x1xf32>
    %cst_11 = arith.constant dense<0.000000e+00> : vector<4x1xf32>
    %28 = vector.multi_reduction <add>, %17, %cst_11 [0] : vector<2x4x1xf32> to vector<4x1xf32>
    %29 = vector.shape_cast %28 : vector<4x1xf32> to vector<1x4x1xf32>
    %cst_12 = arith.constant 2.000000e+00 : f32
    %30 = vector.broadcast %cst_12 : f32 to vector<1x4x1xf32>
    %31 = arith.divf %29, %30 : vector<1x4x1xf32>
    %32 = arith.mulf %27, %27 : vector<1x4x1xf32>
    %33 = arith.subf %31, %32 : vector<1x4x1xf32>
    %c0_13 = arith.constant 0 : index
    %34 = memref.load %arg1[%c0_13] : memref<3xf32, #tpu.memory_space<smem>>
    %35 = vector.broadcast %34 : f32 to vector<2x4x1xf32>
    %36 = arith.mulf %35, %4 : vector<2x4x1xf32>
    %c1 = arith.constant 1 : index
    %37 = memref.load %arg1[%c1] : memref<3xf32, #tpu.memory_space<smem>>
    %38 = vector.broadcast %37 : f32 to vector<2x1x1xf32>
    %39 = arith.mulf %38, %15 : vector<2x1x1xf32>
    %40 = vector.broadcast %39 : vector<2x1x1xf32> to vector<2x4x1xf32>
    %41 = arith.addf %36, %40 : vector<2x4x1xf32>
    %c2 = arith.constant 2 : index
    %42 = memref.load %arg1[%c2] : memref<3xf32, #tpu.memory_space<smem>>
    %43 = vector.broadcast %42 : f32 to vector<1x4x1xf32>
    %44 = arith.mulf %43, %27 : vector<1x4x1xf32>
    %45 = vector.broadcast %44 : vector<1x4x1xf32> to vector<2x4x1xf32>
    %46 = arith.addf %41, %45 : vector<2x4x1xf32>
    %c0_14 = arith.constant 0 : index
    %47 = memref.load %arg2[%c0_14] : memref<3xf32, #tpu.memory_space<smem>>
    %48 = vector.broadcast %47 : f32 to vector<2x4x1xf32>
    %49 = arith.mulf %48, %11 : vector<2x4x1xf32>
    %c1_15 = arith.constant 1 : index
    %50 = memref.load %arg2[%c1_15] : memref<3xf32, #tpu.memory_space<smem>>
    %51 = vector.broadcast %50 : f32 to vector<2x1x1xf32>
    %52 = arith.mulf %51, %23 : vector<2x1x1xf32>
    %53 = vector.broadcast %52 : vector<2x1x1xf32> to vector<2x4x1xf32>
    %54 = arith.addf %49, %53 : vector<2x4x1xf32>
    %c2_16 = arith.constant 2 : index
    %55 = memref.load %arg2[%c2_16] : memref<3xf32, #tpu.memory_space<smem>>
    %56 = vector.broadcast %55 : f32 to vector<1x4x1xf32>
    %57 = arith.mulf %56, %33 : vector<1x4x1xf32>
    %58 = vector.broadcast %57 : vector<1x4x1xf32> to vector<2x4x1xf32>
    %59 = arith.addf %54, %58 : vector<2x4x1xf32>
    %c0_17 = arith.constant 0 : index
    %c0_18 = arith.constant 0 : index
    %c0_19 = arith.constant 0 : index
    %60 = vector.load %arg4[%c0_17, %c0_18, %c0_19] : memref<1x4x1xf32, #tpu.memory_space<vmem>>, vector<1x4x1xf32>
    %cst_20 = arith.constant 9.99999974E-6 : f32
    %61 = vector.broadcast %cst_20 : f32 to vector<2x4x1xf32>
    %62 = arith.addf %59, %61 : vector<2x4x1xf32>
    %63 = math.rsqrt %62 : vector<2x4x1xf32>
    %64 = vector.broadcast %60 : vector<1x4x1xf32> to vector<2x4x1xf32>
    %65 = arith.mulf %64, %63 : vector<2x4x1xf32>
    %c0_21 = arith.constant 0 : index
    %c0_22 = arith.constant 0 : index
    %c0_23 = arith.constant 0 : index
    %66 = vector.load %arg5[%c0_21, %c0_22, %c0_23] : memref<1x4x1xf32, #tpu.memory_space<vmem>>, vector<1x4x1xf32>
    %67 = arith.mulf %46, %65 : vector<2x4x1xf32>
    %68 = vector.broadcast %66 : vector<1x4x1xf32> to vector<2x4x1xf32>
    %69 = arith.subf %68, %67 : vector<2x4x1xf32>
    %70 = vector.broadcast %65 : vector<2x4x1xf32> to vector<2x4x256xf32>
    %71 = arith.mulf %0, %70 : vector<2x4x256xf32>
    %72 = vector.broadcast %69 : vector<2x4x1xf32> to vector<2x4x256xf32>
    %73 = arith.addf %71, %72 : vector<2x4x256xf32>
    %c0_24 = arith.constant 0 : index
    %c0_25 = arith.constant 0 : index
    %c0_26 = arith.constant 0 : index
    %74 = vector.load %arg6[%c0_24, %c0_25, %c0_26] : memref<2x4x256xf32, #tpu.memory_space<vmem>>, vector<2x4x256xf32>
    tpu.vector_store %arg6[%c0_24, %c0_25, %c0_26], %73 {strides = array<i32>} : memref<2x4x256xf32, #tpu.memory_space<vmem>>, vector<2x4x256xf32>,
    return
  }
  func.func @transform_0(%arg0: i32) -> i32 {
    %c0_i32 = arith.constant 0 : i32
    %c0_i32_0 = arith.constant 0 : i32
    return %c0_i32 : i32
  }
  func.func @transform_1(%arg0: i32) -> i32 {
    %c0_i32 = arith.constant 0 : i32
    %c0_i32_0 = arith.constant 0 : i32
    return %c0_i32 : i32
  }
  func.func @transform_2(%arg0: i32) -> (i32, i32, i32) {
    %c0_i32 = arith.constant 0 : i32
    %c0_i32_0 = arith.constant 0 : i32
    %c0_i32_1 = arith.constant 0 : i32
    %c0_i32_2 = arith.constant 0 : i32
    return %c0_i32, %c0_i32_0, %c0_i32_1 : i32, i32, i32
  }
  func.func @transform_3(%arg0: i32) -> (i32, i32, i32) {
    %c0_i32 = arith.constant 0 : i32
    %c0_i32_0 = arith.constant 0 : i32
    %c0_i32_1 = arith.constant 0 : i32
    %c0_i32_2 = arith.constant 0 : i32
    return %c0_i32, %c0_i32_0, %c0_i32_1 : i32, i32, i32
  }
  func.func @transform_4(%arg0: i32) -> (i32, i32, i32) {
    %c0_i32 = arith.constant 0 : i32
    %c0_i32_0 = arith.constant 0 : i32
    %c0_i32_1 = arith.constant 0 : i32
    %c0_i32_2 = arith.constant 0 : i32
    return %c0_i32, %c0_i32_0, %c0_i32_1 : i32, i32, i32
  }
  func.func @transform_5(%arg0: i32) -> (i32, i32, i32) {
    %c0_i32 = arith.constant 0 : i32
    %c0_i32_0 = arith.constant 0 : i32
    %c0_i32_1 = arith.constant 0 : i32
    %c0_i32_2 = arith.constant 0 : i32
    return %c0_i32, %c0_i32_0, %c0_i32_1 : i32, i32, i32
  }
}

</mosaic_0001>

<llo_original>
// kernel: tpu_custom_call.1
$region0: #{tpu_custom_call.1}
  #allocation0 [shape = 'u32[]', space=smem, size = 0x4, offset = 0x4, fixed_abs, tag = 'smem constant byte address 0x4 - core index']
  #allocation1 [shape = 'u32[144,128]{1,0:T(1,128)}', space=vmem, size = 0x12000, scoped, tag = 'internal scratch']
  %s0 = inlined_call_operand.vmem [shape: f32[3], index: 0, kind: input, shape index: {}]
  %s1 = inlined_call_operand.vmem [shape: f32[3], index: 1, kind: input, shape index: {}]
  %s2 = inlined_call_operand.hbm [shape: f32[2,4,256], index: 2, kind: input, shape index: {}]
  %s3 = inlined_call_operand.vmem [shape: f32[1,4,1], index: 3, kind: input, shape index: {}]
  %s4 = inlined_call_operand.vmem [shape: f32[1,4,1], index: 4, kind: input, shape index: {}]
  %s5 = inlined_call_operand.hbm [shape: f32[2,4,256], index: 5, kind: output, shape index: {}]
  %s6 = sld [smem:[#allocation0]]
  $region42: #{tpu_custom_call.1} parent=0
    _
  %s8 = ssub.s32 1, %s6
  %s9 = scalar_select 0, %s8, %s6
  $region1: #{tpu_custom_call.1} parent=0
    #allocation2 [shape = 'u8[512]{0}', space=smem, size = 0x200, scoped, tag = 'input window, operand 0, single buffered']
    #allocation3 [shape = 's32[1]{0}', space=sflag, size = 0x4, scoped, tag = 'scoped memory for tpu_custom_call.1']
    #allocation4 [shape = 's32[1]{0}', space=sflag, size = 0x4, scoped, tag = 'scoped memory for tpu_custom_call.1']
    #allocation5 [shape = 's32[1]{0}', space=sflag, size = 0x4, scoped, tag = 'scoped memory for tpu_custom_call.1']
    #allocation6 [shape = 'u8[512]{0}', space=smem, size = 0x200, scoped, tag = 'input window, operand 1, single buffered']
    #allocation7 [shape = 's32[1]{0}', space=sflag, size = 0x4, scoped, tag = 'scoped memory for tpu_custom_call.1']
    #allocation8 [shape = 'u8[8192]{0}', space=vmem, size = 0x2000, scoped, tag = 'input window, operand 2, single buffered']
    #allocation9 [shape = 'u8[8192]{0}', space=vmem, size = 0x2000, scoped, tag = 'output window, operand 0, single buffered']
    %10 = vsyncpa [#allocation5], 0
    %11 = vsyncpa [#allocation7], 0
    %12 = vsyncpa [#allocation3], 0
    %13 = vsyncpa [#allocation4], 0
    // Predicated region
    $region2: #{tpu_custom_call.1} parent=1 // pred_check
      _
    $region3: #{tpu_custom_call.1} parent=1 // pred_check_branch
      %15 = sbr.rel (0) target = $region5
    $region4: #{tpu_custom_call.1} parent=1 // pred_region
      %s17 = ssub.s32 16, 16
      %18 = vsyncadd [#allocation5], %s17
      %s20 = sshll.u32 %s0, 4
      %s21 = int_to_ptr.vmem [resolvable:$true] %s20
      %23 = dma.vmem_to_smem %s21, 16, [#allocation2], [#allocation5]
    $region5: #{tpu_custom_call.1} parent=1 // pred_fallthru
      _
    // Predicated region
    $region6: #{tpu_custom_call.1} parent=1 // pred_check
      _
    $region7: #{tpu_custom_call.1} parent=1 // pred_check_branch
      %25 = sbr.rel (0) target = $region9
    $region8: #{tpu_custom_call.1} parent=1 // pred_region
      %s27 = ssub.s32 16, 16
      %28 = vsyncadd [#allocation7], %s27
      %s30 = sshll.u32 %s1, 4
      %s31 = int_to_ptr.vmem [resolvable:$true] %s30
      %33 = dma.vmem_to_smem %s31, 16, [#allocation6], [#allocation7]
    $region9: #{tpu_custom_call.1} parent=1 // pred_fallthru
      _
    // Predicated region
    $region10: #{tpu_custom_call.1} parent=1 // pred_check
      _
    $region11: #{tpu_custom_call.1} parent=1 // pred_check_branch
      %35 = sbr.rel (0) target = $region13
    $region12: #{tpu_custom_call.1} parent=1 // pred_region
      %s37 = ssub.s32 256, 256
      %38 = vsyncadd [#allocation3], %s37
      %s39 = sshll.u32 [#allocation8], 4
      %s40 = int_to_ptr.vmem [resolvable:$true] %s39
      %45 = dma.hbm_to_vmem [thread:$0]  %s2, 256, %s40, [#allocation3], 128, 128, 8
    $region13: #{tpu_custom_call.1} parent=1 // pred_fallthru
      _
    // Predicated region
    $region14: #{tpu_custom_call.1} parent=1 // pred_check
      _
    $region15: #{tpu_custom_call.1} parent=1 // pred_check_branch
      %47 = sbr.rel (0) target = $region17
    $region16: #{tpu_custom_call.1} parent=1 // pred_region
      _
    $region17: #{tpu_custom_call.1} parent=1 // pred_fallthru
      _
    // Predicated region
    $region18: #{tpu_custom_call.1} parent=1 // pred_check
      _
    $region19: #{tpu_custom_call.1} parent=1 // pred_check_branch
      %49 = sbr.rel (0) target = $region21
    $region20: #{tpu_custom_call.1} parent=1 // pred_region
      _
    $region21: #{tpu_custom_call.1} parent=1 // pred_fallthru
      _
    // Predicated region
    $region22: #{tpu_custom_call.1} parent=1 // pred_check
      _
    $region23: #{tpu_custom_call.1} parent=1 // pred_check_branch
      %51 = sbr.rel (0) target = $region25
    $region24: #{tpu_custom_call.1} parent=1 // pred_region
      %52 = dma.done [#allocation5], 16
    $region25: #{tpu_custom_call.1} parent=1 // pred_fallthru
      _
    // Predicated region
    $region26: #{tpu_custom_call.1} parent=1 // pred_check
      _
    $region27: #{tpu_custom_call.1} parent=1 // pred_check_branch
      %54 = sbr.rel (0) target = $region29
    $region28: #{tpu_custom_call.1} parent=1 // pred_region
      %55 = dma.done [#allocation7], 16
    $region29: #{tpu_custom_call.1} parent=1 // pred_fallthru
      _
    // Predicated region
    $region30: #{tpu_custom_call.1} parent=1 // pred_check
      _
    $region31: #{tpu_custom_call.1} parent=1 // pred_check_branch
      %57 = sbr.rel (0) target = $region33
    $region32: #{tpu_custom_call.1} parent=1 // pred_region
      %58 = dma.done [#allocation3], 256
    $region33: #{tpu_custom_call.1} parent=1 // pred_fallthru
      _
    %59 = sfence
    %v60 = vld [vmem:[#allocation8] sm:$0xff]
    %v61 = vld [vmem:[#allocation8 + $0x8] sm:$0xff]
    %v64 = vcombine.high %v60, %v60
    %v65 = vcombine.high %v61, %v61
    %vm68 = vcmask 1043456
    %v69 = vsel %vm68, %v60, 0.0
    %v70 = vsel %vm68, %v64, 0.0
    %v71 = vadd.f32 %v69, %v70
    %72 = vadd.xlane.f32.xlu0 %v71
    %v73 = vpop.xlane.xlu0 %72
    %v74 = vsel %vm68, %v61, 0.0
    %v75 = vsel %vm68, %v65, 0.0
    %v76 = vadd.f32 %v74, %v75
    %77 = vadd.xlane.f32.xlu0 %v76
    %v78 = vpop.xlane.xlu0 %77
    %v79 = vmul.f32 %v73, 0.00390625
    %v80 = vmul.f32 %v78, 0.00390625
    %v84 = vunpack.c.l.s4 839922192
    %v85 = vunpack.c.0.s8 %v84
    %v86 = vlaneseq
    %v87 = vshrl.u32 %v86, 7
    %v88 = vsub.s32 %v85, %v87
    %v89 = vrot.slane %v79, %v88
    %v91 = vunpack.c.l.s4 839922192
    %v92 = vunpack.c.0.s8 %v91
    %v93 = vlaneseq
    %v94 = vshrl.u32 %v93, 7
    %v95 = vsub.s32 %v92, %v94
    %v96 = vrot.slane %v80, %v95
    %v99 = vsub.f32 %v60, %v89
    %v100 = vsub.f32 %v61, %v96
    %v101 = vmul.f32 %v99, %v99
    %v102 = vmul.f32 %v100, %v100
    %v105 = vcombine.high %v101, %v101
    %v106 = vcombine.high %v102, %v102
    %v109 = vsel %vm68, %v101, 0.0
    %v110 = vsel %vm68, %v105, 0.0
    %v111 = vadd.f32 %v109, %v110
    %112 = vadd.xlane.f32.xlu0 %v111
    %v113 = vpop.xlane.xlu0 %112
    %v114 = vsel %vm68, %v102, 0.0
    %v115 = vsel %vm68, %v106, 0.0
    %v116 = vadd.f32 %v114, %v115
    %117 = vadd.xlane.f32.xlu0 %v116
    %v118 = vpop.xlane.xlu0 %117
    %v119 = vmul.f32 %v113, 0.003921569
    %v120 = vmul.f32 %v118, 0.003921569
    %v121 = vsel %vm68, %v79, 0.0
    %v122 = vrot.slane %v121, 4
    %v123 = vadd.f32 %v121, %v122
    %v124 = vrot.slane %v123, 2
    %v125 = vadd.f32 %v123, %v124
    %v126 = vrot.slane %v125, 1
    %v127 = vadd.f32 %v125, %v126
    %v128 = vsel %vm68, %v80, 0.0
    %v129 = vrot.slane %v128, 4
    %v130 = vadd.f32 %v128, %v129
    %v131 = vrot.slane %v130, 2
    %v132 = vadd.f32 %v130, %v131
    %v133 = vrot.slane %v132, 1
    %v134 = vadd.f32 %v132, %v133
    %v135 = vrcp.pop 4.0
    %v136 = vmul.f32 %v127, %v135
    %v137 = vmul.f32 %v134, %v135
    %v138 = vmul.f32 %v79, %v79
    %v139 = vmul.f32 %v80, %v80
    %v140 = vadd.f32 %v119, %v138
    %v141 = vadd.f32 %v120, %v139
    %v142 = vsel %vm68, %v140, 0.0
    %v143 = vrot.slane %v142, 4
    %v144 = vadd.f32 %v142, %v143
    %v145 = vrot.slane %v144, 2
    %v146 = vadd.f32 %v144, %v145
    %v147 = vrot.slane %v146, 1
    %v148 = vadd.f32 %v146, %v147
    %v149 = vsel %vm68, %v141, 0.0
    %v150 = vrot.slane %v149, 4
    %v151 = vadd.f32 %v149, %v150
    %v152 = vrot.slane %v151, 2
    %v153 = vadd.f32 %v151, %v152
    %v154 = vrot.slane %v153, 1
    %v155 = vadd.f32 %v153, %v154
    %v156 = vmul.f32 %v148, %v135
    %v157 = vmul.f32 %v155, %v135
    %v158 = vmul.f32 %v136, %v136
    %v159 = vmul.f32 %v137, %v137
    %v160 = vsub.f32 %v156, %v158
    %v161 = vsub.f32 %v157, %v159
    %v162 = vadd.f32 %v121, %v128
    %v163 = vrcp.pop 2.0
    %v164 = vmul.f32 %v162, %v163
    %v165 = vadd.f32 %v142, %v149
    %v166 = vmul.f32 %v165, %v163
    %v167 = vmul.f32 %v164, %v164
    %v168 = vsub.f32 %v166, %v167
    %s169 = sld [smem:[#allocation2]]
    %v170 = vstv %s169
    %v171 = vmul.f32 %v170, %v79
    %v172 = vmul.f32 %v170, %v80
    %s173 = sld [smem:[#allocation2 + $0x1]]
    %v174 = vstv %s173
    %v175 = vmul.f32 %v174, %v136
    %v176 = vmul.f32 %v174, %v137
    %v177 = vadd.f32 %v171, %v175
    %v178 = vadd.f32 %v172, %v176
    %s179 = sld [smem:[#allocation2 + $0x2]]
    %v180 = vstv %s179
    %v181 = vmul.f32 %v180, %v164
    %v182 = vadd.f32 %v177, %v181
    %v183 = vadd.f32 %v178, %v181
    %s184 = sld [smem:[#allocation6]]
    %v185 = vstv %s184
    %v186 = vmul.f32 %v185, %v119
    %v187 = vmul.f32 %v185, %v120
    %s188 = sld [smem:[#allocation6 + $0x1]]
    %v189 = vstv %s188
    %v190 = vmul.f32 %v189, %v160
    %v191 = vmul.f32 %v189, %v161
    %v192 = vadd.f32 %v186, %v190
    %v193 = vadd.f32 %v187, %v191
    %s194 = sld [smem:[#allocation6 + $0x2]]
    %v195 = vstv %s194
    %v196 = vmul.f32 %v195, %v168
    %v197 = vadd.f32 %v192, %v196
    %v198 = vadd.f32 %v193, %v196
    %v199 = vld [vmem:[%s3] sm:$0xf]
    %v200 = vadd.f32 %v197, 1e-05
    %v201 = vadd.f32 %v198, 1e-05
    %v202 = vrsqrt.pop %v200
    %v203 = vrsqrt.pop %v201
    %v204 = vmul.f32 %v199, %v202
    %v205 = vmul.f32 %v199, %v203
    %v206 = vld [vmem:[%s4] sm:$0xf]
    %v207 = vmul.f32 %v182, %v204
    %v208 = vmul.f32 %v183, %v205
    %v209 = vsub.f32 %v206, %v207
    %v210 = vsub.f32 %v206, %v208
    %212 = vset.pattern.permute.xlu0 0
    %213 = vperm.xlu0 %212, %v204
    %v214 = vpop.permute.xlu0 %213
    %216 = vset.pattern.permute.xlu0 0
    %217 = vperm.xlu0 %216, %v205
    %v218 = vpop.permute.xlu0 %217
    %v220 = vunpack.c.l.s4 839922192
    %v221 = vunpack.c.0.s8 %v220
    %v222 = vlaneseq
    %v223 = vshrl.u32 %v222, 7
    %v224 = vsub.s32 %v221, %v223
    %v225 = vrot.slane %v214, %v224
    %v227 = vunpack.c.l.s4 839922192
    %v228 = vunpack.c.0.s8 %v227
    %v229 = vlaneseq
    %v230 = vshrl.u32 %v229, 7
    %v231 = vsub.s32 %v228, %v230
    %v232 = vrot.slane %v218, %v231
    %v235 = vmul.f32 %v60, %v225
    %v236 = vmul.f32 %v61, %v232
    %238 = vset.pattern.permute.xlu0 0
    %239 = vperm.xlu0 %238, %v209
    %v240 = vpop.permute.xlu0 %239
    %242 = vset.pattern.permute.xlu0 0
    %243 = vperm.xlu0 %242, %v210
    %v244 = vpop.permute.xlu0 %243
    %v246 = vunpack.c.l.s4 839922192
    %v247 = vunpack.c.0.s8 %v246
    %v248 = vlaneseq
    %v249 = vshrl.u32 %v248, 7
    %v250 = vsub.s32 %v247, %v249
    %v251 = vrot.slane %v240, %v250
    %v253 = vunpack.c.l.s4 839922192
    %v254 = vunpack.c.0.s8 %v253
    %v255 = vlaneseq
    %v256 = vshrl.u32 %v255, 7
    %v257 = vsub.s32 %v254, %v256
    %v258 = vrot.slane %v244, %v257
    %v261 = vadd.f32 %v235, %v251
    %v262 = vadd.f32 %v236, %v258
    %263 = vst [vmem:[#allocation9] sm:$0xff] %v261
    %264 = vst [vmem:[#allocation9 + $0x8] sm:$0xff] %v262
    // Predicated region
    $region34: #{tpu_custom_call.1} parent=1 // pred_check
      _
    $region35: #{tpu_custom_call.1} parent=1 // pred_check_branch
      %266 = sbr.rel (0) target = $region37
    $region36: #{tpu_custom_call.1} parent=1 // pred_region
      %s268 = ssub.s32 256, 256
      %269 = vsyncadd [#allocation4], %s268
      %s270 = sshll.u32 [#allocation9], 4
      %s271 = int_to_ptr.vmem [resolvable:$true] %s270
      %276 = dma.vmem_to_hbm [thread:$0]  %s271, 256, %s5, [#allocation4], 128, 128, 8
    $region37: #{tpu_custom_call.1} parent=1 // pred_fallthru
      _
    // Predicated region
    $region38: #{tpu_custom_call.1} parent=1 // pred_check
      _
    $region39: #{tpu_custom_call.1} parent=1 // pred_check_branch
      %278 = sbr.rel (0) target = $region41
    $region40: #{tpu_custom_call.1} parent=1 // pred_region
      %279 = dma.done [#allocation4], 256
    $region41: #{tpu_custom_call.1} parent=1 // pred_fallthru
      _
    %280 = vsyncpa [#allocation3], 1
    %281 = vsyncpa [#allocation4], 1
    %282 = vsyncpa [#allocation5], 1
    %283 = vsyncpa [#allocation7], 1

</llo_original>
